<compile_context>
chip_gen: v7x
topology: tpu7x:2x2x1
jax: 0.10.0
libtpu: 0.0.40
codegen_flags: <defaults>
</compile_context>

<pallas_src>
import math

import jax
import jax.numpy as jnp
from jax.experimental import pallas as pl
from jax.experimental.pallas import tpu as pltpu

HIDDEN = 15
NUM_CLASSES = 6
LANE = 128            # TPU lane width; hidden/class dims padded to this
_NEG = -1e30          # effectively -inf for padded class lanes
_DEFAULT_TILE_B = 1024


def _round_up(n, m):
    return ((n + m - 1) // m) * m


def _choose_tile_b(B, max_tile):
    """Pick a batch tile: >=2 grid steps when possible (v7x has 2 TensorCores)
    and a padding-vs-step-overhead tradeoff for awkward batch sizes."""
    half = _round_up(max((B + 1) // 2, 8), 16)
    cap = max(16, min(max_tile, half))
    cands = [t for t in (16, 32, 64, 128, 256, 512, 1024, 2048) if t <= cap]
    big = [t for t in cands if t * 4 >= cap] or cands   # avoid pathological step counts
    # cost = steps * ~overhead-equivalent-rows + wasted (padded) rows; tie -> larger tile
    def cost(t):
        steps = _round_up(B, t) // t
        return (steps * 64 + (_round_up(B, t) - B), -t)
    return min(big, key=cost)


# ---------------------------------------------------------------------------
# Kernel bodies
# ---------------------------------------------------------------------------
def _forward_tile(x_ref, w1_ref, wh_ref, bs_ref):
    """MLP forward for one (TILE_B, D) tile.

    Matmul operands use the weights' dtype (f32 or bf16); accumulation,
    biases, tanh and softmax stay in f32. Returns padded (TILE_B, 128)
    softmax probabilities (padded class lanes are exactly 0) and the class
    mask."""
    x = x_ref[...]
    w1 = w1_ref[...]
    bs = bs_ref[...]                                   # (4, 128) f32 biases
    cd = w1.dtype
    h = jnp.tanh(jnp.dot(x.astype(cd), w1,
                         preferred_element_type=jnp.float32) + bs[0:1])
    h = jnp.tanh(jnp.dot(h.astype(cd), wh_ref[0],
                         preferred_element_type=jnp.float32) + bs[1:2])
    h = jnp.tanh(jnp.dot(h.astype(cd), wh_ref[1],
                         preferred_element_type=jnp.float32) + bs[2:3])
    logits = jnp.dot(h.astype(cd), wh_ref[2],
                     preferred_element_type=jnp.float32) + bs[3:4]

    class_mask = jax.lax.broadcasted_iota(jnp.int32, logits.shape, 1) < NUM_CLASSES
    logits = jnp.where(class_mask, logits, _NEG)

    m = jnp.max(logits, axis=1, keepdims=True)
    e = jnp.exp(logits - m)
    probs = e / jnp.sum(e, axis=1, keepdims=True)      # exact divide: rows sum to 1
    return probs, class_mask


def _probs_kernel(x_ref, w1_ref, wh_ref, bs_ref, out_ref):
    probs, _ = _forward_tile(x_ref, w1_ref, wh_ref, bs_ref)
    out_ref[...] = probs.astype(out_ref.dtype)


def _loss_kernel(x_ref, y_ref, w1_ref, wh_ref, bs_ref, out_ref):
    probs, class_mask = _forward_tile(x_ref, w1_ref, wh_ref, bs_ref)
    # CrossEntropyLoss applied to the softmax output (as the PyTorch module
    # does -> log_softmax over the 6 real lanes of `probs`, gather at label).
    z = jnp.where(class_mask, probs, _NEG)
    m = jnp.max(z, axis=1, keepdims=True)
    lse = m + jnp.log(jnp.sum(jnp.exp(z - m), axis=1, keepdims=True))
    onehot = jax.lax.broadcasted_iota(jnp.int32, z.shape, 1) == y_ref[...]
    nll = -jnp.sum(jnp.where(onehot, z - lse, 0.0), axis=1, keepdims=True)
    # Padded rows carry label -1 -> match no lane -> contribute exactly 0.
    tile_sum = jnp.sum(nll)
    row = jax.lax.broadcasted_iota(jnp.int32, out_ref.shape, 0)
    out_ref[...] = jnp.where(row == 0, tile_sum, 0.0).astype(out_ref.dtype)


# ---------------------------------------------------------------------------
# Wrapper
# ---------------------------------------------------------------------------
def torch_model_forward(x, padded_params, y=None, *, tile_b=None,
                        out_dtype=jnp.float32, return_padded=False):
    """Pallas-backed equivalent of TorchModel.forward.

    x: [B, D] float32. padded_params: output of pad_params(). If y (int
    labels, [B]) is given, returns the scalar CrossEntropyLoss(softmax, y)
    like the PyTorch module; otherwise returns the softmax probs [B, 6]
    (or the padded [b_pad, 128] block if return_padded=True).
    out_dtype=jnp.bfloat16 halves the probs HBM writeback if f32 isn't needed.
    """
    w1, wh, bs = padded_params
    B, D = x.shape

    tb = _choose_tile_b(B, tile_b or _DEFAULT_TILE_B)
    b_pad = _round_up(B, tb)
    if b_pad != B:
        x = jnp.pad(x, ((0, b_pad - B), (0, 0)))
    grid = (b_pad // tb,)

    x_spec = pl.BlockSpec((tb, D), lambda i: (i, 0))
    # Weights/biases: full-array blocks, constant index -> VMEM-resident.
    w1_spec = pl.BlockSpec(w1.shape, lambda i: (0, 0))
    wh_spec = pl.BlockSpec(wh.shape, lambda i: (0, 0, 0))
    bs_spec = pl.BlockSpec(bs.shape, lambda i: (0, 0))

    w_itemsize = jnp.dtype(w1.dtype).itemsize
    weights_bytes = (w1.size + wh.size) * w_itemsize + bs.size * 4
    io_bytes = (tb * D * jnp.dtype(x.dtype).itemsize
                + tb * LANE * jnp.dtype(out_dtype).itemsize + tb * 4)
    vmem_limit = int(min(64 << 20, max(16 << 20,
                                       2 * (io_bytes + weights_bytes) + (4 << 20))))
    cparams = pltpu.CompilerParams(dimension_semantics=("parallel",),
                                   vmem_limit_bytes=vmem_limit)

    if y is None:
        probs_pad = pl.pallas_call(
            _probs_kernel,
            out_shape=jax.ShapeDtypeStruct((b_pad, LANE), out_dtype),
            grid=grid,
            in_specs=[x_spec, w1_spec, wh_spec, bs_spec],
            out_specs=pl.BlockSpec((tb, LANE), lambda i: (i, 0)),
            compiler_params=cparams,
        )(x, w1, wh, bs)
        if return_padded:
            return probs_pad
        return probs_pad[:B, :NUM_CLASSES]

    # Padded rows get label -1 (matches no class lane) -> in-kernel masking of
    # the tail without an extra SMEM scalar.
    y_pad = jnp.full((b_pad, 1), -1, jnp.int32).at[:B, 0].set(y.astype(jnp.int32))
    y_spec = pl.BlockSpec((tb, 1), lambda i: (i, 0))
    n_tiles = b_pad // tb
    partial = pl.pallas_call(
        _loss_kernel,
        out_shape=jax.ShapeDtypeStruct((n_tiles * 8, LANE), jnp.float32),
        grid=grid,
        in_specs=[x_spec, y_spec, w1_spec, wh_spec, bs_spec],
        out_specs=pl.BlockSpec((8, LANE), lambda i: (i, 0)),
        compiler_params=cparams,
    )(x, y_pad, w1, wh, bs)
    # Row 0 of each per-tile (8,128) block holds that tile's NLL sum
    # (lane-dense); other rows are zero, so summing lane 0 gives the total.
    return jnp.sum(partial[:, 0]) / B


# ---------------------------------------------------------------------------
# Parameter init / padding
# ---------------------------------------------------------------------------
def init_params(key, input_size):
    """nn.Linear-style init: U(-1/sqrt(fan_in), +1/sqrt(fan_in)). Weights [in, out]."""
    dims = [(input_size, HIDDEN), (HIDDEN, HIDDEN),
            (HIDDEN, HIDDEN), (HIDDEN, NUM_CLASSES)]
    params = []
    for fan_in, fan_out in dims:
        key, kw, kb = jax.random.split(key, 3)
        bound = 1.0 / math.sqrt(fan_in)
        w = jax.random.uniform(kw, (fan_in, fan_out), jnp.float32, -bound, bound)
        b = jax.random.uniform(kb, (fan_out,), jnp.float32, -bound, bound)
        params.append((w, b))
    return params


def pad_params(params, compute_dtype=jnp.float32):
    """Pad & pack once to lane-aligned shapes:
       w1 [D,128] (compute_dtype), wh [3,128,128] (compute_dtype), biases [4,128] (f32).

    Zero padding keeps the math exact (padded hidden units are tanh(0)=0 and
    contribute nothing; padded class logits are masked in-kernel before
    softmax). compute_dtype=bf16 enables the MXU-native operand path on
    v5e/v6e/v7x (accumulation/tanh/softmax stay f32)."""
    (w1, b1), (w2, b2), (w3, b3), (w4, b4) = params
    D = w1.shape[0]

    def pad_w(w, rows):
        out = jnp.zeros((rows, LANE), jnp.float32)
        return out.at[:w.shape[0], :w.shape[1]].set(w)

    def pad_b(b):
        return jnp.zeros((LANE,), jnp.float32).at[:b.shape[-1]].set(b)

    w1p = pad_w(w1, D).astype(compute_dtype)
    whp = jnp.stack([pad_w(w2, LANE), pad_w(w3, LANE),
                     pad_w(w4, LANE)]).astype(compute_dtype)
    bsp = jnp.stack([pad_b(b1), pad_b(b2), pad_b(b3), pad_b(b4)])  # f32
    return w1p, whp, bsp


# ---------------------------------------------------------------------------
# Pure-JAX reference (unpadded params)
# ---------------------------------------------------------------------------
def _reference_forward(x, params, y=None):
    (w1, b1), (w2, b2), (w3, b3), (w4, b4) = params
    h = jnp.tanh(x @ w1 + b1)
    h = jnp.tanh(h @ w2 + b2)
    h = jnp.tanh(h @ w3 + b3)
    logits = h @ w4 + b4
    y_pred = jax.nn.softmax(logits, axis=1)
    if y is None:
        return y_pred
    log_probs = jax.nn.log_softmax(y_pred, axis=1)
    return jnp.mean(-jnp.take_along_axis(log_probs, y.astype(jnp.int32)[:, None], axis=1))


if __name__ == "__main__":
    key = jax.random.PRNGKey(0)
    B, D = 8, 32  # batch, input_size

    k_params, k_x, k_y = jax.random.split(key, 3)
    params = init_params(k_params, D)
    x = jax.random.normal(k_x, (B, D), jnp.float32)
    y = jax.random.randint(k_y, (B,), 0, NUM_CLASSES, jnp.int32)

    padded_f32 = pad_params(params, jnp.float32)
    padded_bf16 = pad_params(params, jnp.bfloat16)   # MXU-native operands (all gens)

    ref_probs = _reference_forward(x, params)
    ref_loss = _reference_forward(x, params, y)

    # --- f32 path (tight check) ---
    probs = jax.block_until_ready(torch_model_forward(x, padded_f32))
    assert probs.shape == (B, NUM_CLASSES)
    assert jnp.allclose(probs, ref_probs, atol=1e-3, rtol=1e-3)
    assert jnp.allclose(jnp.sum(probs, axis=1), 1.0, atol=1e-3)

    loss = jax.block_until_ready(torch_model_forward(x, padded_f32, y))
    assert jnp.allclose(loss, ref_loss, atol=1e-3, rtol=1e-3)

    # --- bf16 operand path (looser tolerance) ---
    probs_bf16 = jax.block_until_ready(torch_model_forward(x, padded_bf16))
    assert jnp.allclose(probs_bf16, ref_probs, atol=2e-2, rtol=2e-2)
    loss_bf16 = jax.block_until_ready(torch_model_forward(x, padded_bf16, y))
    assert jnp.allclose(loss_bf16, ref_loss, atol=2e-2, rtol=2e-2)

    # --- ragged / multi-tile batches (padding path + per-tile loss reduction) ---
    B2 = 20
    x2 = jax.random.normal(jax.random.PRNGKey(1), (B2, D), jnp.float32)
    probs2 = jax.block_until_ready(torch_model_forward(x2, padded_f32))
    assert probs2.shape == (B2, NUM_CLASSES)
    assert jnp.allclose(probs2, _reference_forward(x2, params), atol=1e-3, rtol=1e-3)

    B3 = 40
    k3x, k3y = jax.random.split(jax.random.PRNGKey(2))
    x3 = jax.random.normal(k3x, (B3, D), jnp.float32)
    y3 = jax.random.randint(k3y, (B3,), 0, NUM_CLASSES, jnp.int32)
    loss3 = jax.block_until_ready(torch_model_forward(x3, padded_f32, y3))
    assert jnp.allclose(loss3, _reference_forward(x3, params, y3), atol=1e-3, rtol=1e-3)

    print("KERNEL_OK")
</pallas_src>

<mosaic_0001>
module attributes {stable_mosaic.version = 11 : i64} {
  func.func @_probs_kernel(%arg0: i32, %arg1: memref<16x32xf32, #tpu.memory_space<vmem>>, %arg2: memref<32x128xf32, #tpu.memory_space<vmem>>, %arg3: memref<3x128x128xf32, #tpu.memory_space<vmem>>, %arg4: memref<4x128xf32, #tpu.memory_space<vmem>>, %arg5: memref<16x128xf32, #tpu.memory_space<vmem>>) attributes {dimension_semantics = [#tpu.dimension_semantics<parallel>], iteration_bounds = array<i64: 1>, scalar_prefetch = 0 : i64, scratch_operands = 0 : i64, tpu.core_type = #tpu.core_type<tc>, window_params = [{transform_indices = @transform_0, window_bounds = array<i64: 16, 32>}, {pipeline_mode = #tpu.pipeline_mode<synchronous>, transform_indices = @transform_1, window_bounds = array<i64: 32, 128>}, {pipeline_mode = #tpu.pipeline_mode<synchronous>, transform_indices = @transform_2, window_bounds = array<i64: 3, 128, 128>}, {pipeline_mode = #tpu.pipeline_mode<synchronous>, transform_indices = @transform_3, window_bounds = array<i64: 4, 128>}, {transform_indices = @transform_4, window_bounds = array<i64: 16, 128>}]} {
    %c0 = arith.constant 0 : index
    %c0_0 = arith.constant 0 : index
    %0 = vector.load %arg1[%c0, %c0_0] : memref<16x32xf32, #tpu.memory_space<vmem>>, vector<16x32xf32>
    %c0_1 = arith.constant 0 : index
    %c0_2 = arith.constant 0 : index
    %1 = vector.load %arg2[%c0_1, %c0_2] : memref<32x128xf32, #tpu.memory_space<vmem>>, vector<32x128xf32>
    %c0_3 = arith.constant 0 : index
    %c0_4 = arith.constant 0 : index
    %2 = vector.load %arg4[%c0_3, %c0_4] : memref<4x128xf32, #tpu.memory_space<vmem>>, vector<4x128xf32>
    %cst = arith.constant dense<0.000000e+00> : vector<16x128xf32>
    %3 = tpu.matmul %0, %1, %cst {dimension_numbers = #tpu.dot_dimension_numbers<[1], [0], [0], [1], [0, 0, 1, 1], [], []>} : vector<16x32xf32>, vector<32x128xf32>, vector<16x128xf32> -> vector<16x128xf32>
    %4 = vector.extract_strided_slice %2 {offsets = [0, 0], sizes = [1, 128], strides = [1, 1]} : vector<4x128xf32> to vector<1x128xf32>
    %5 = vector.broadcast %4 : vector<1x128xf32> to vector<16x128xf32>
    %6 = arith.addf %3, %5 : vector<16x128xf32>
    %7 = math.tanh %6 : vector<16x128xf32>
    %c0_5 = arith.constant 0 : index
    %c0_6 = arith.constant 0 : index
    %c0_7 = arith.constant 0 : index
    %8 = vector.load %arg3[%c0_5, %c0_6, %c0_7] : memref<3x128x128xf32, #tpu.memory_space<vmem>>, vector<1x128x128xf32>
    %9 = vector.shape_cast %8 : vector<1x128x128xf32> to vector<128x128xf32>
    %cst_8 = arith.constant dense<0.000000e+00> : vector<16x128xf32>
    %10 = tpu.matmul %7, %9, %cst_8 {dimension_numbers = #tpu.dot_dimension_numbers<[1], [0], [0], [1], [0, 0, 1, 1], [], []>} : vector<16x128xf32>, vector<128x128xf32>, vector<16x128xf32> -> vector<16x128xf32>
    %11 = vector.extract_strided_slice %2 {offsets = [1, 0], sizes = [1, 128], strides = [1, 1]} : vector<4x128xf32> to vector<1x128xf32>
    %12 = vector.broadcast %11 : vector<1x128xf32> to vector<16x128xf32>
    %13 = arith.addf %10, %12 : vector<16x128xf32>
    %14 = math.tanh %13 : vector<16x128xf32>
    %c1 = arith.constant 1 : index
    %c0_9 = arith.constant 0 : index
    %c0_10 = arith.constant 0 : index
    %15 = vector.load %arg3[%c1, %c0_9, %c0_10] : memref<3x128x128xf32, #tpu.memory_space<vmem>>, vector<1x128x128xf32>
    %16 = vector.shape_cast %15 : vector<1x128x128xf32> to vector<128x128xf32>
    %cst_11 = arith.constant dense<0.000000e+00> : vector<16x128xf32>
    %17 = tpu.matmul %14, %16, %cst_11 {dimension_numbers = #tpu.dot_dimension_numbers<[1], [0], [0], [1], [0, 0, 1, 1], [], []>} : vector<16x128xf32>, vector<128x128xf32>, vector<16x128xf32> -> vector<16x128xf32>
    %18 = vector.extract_strided_slice %2 {offsets = [2, 0], sizes = [1, 128], strides = [1, 1]} : vector<4x128xf32> to vector<1x128xf32>
    %19 = vector.broadcast %18 : vector<1x128xf32> to vector<16x128xf32>
    %20 = arith.addf %17, %19 : vector<16x128xf32>
    %21 = math.tanh %20 : vector<16x128xf32>
    %c2 = arith.constant 2 : index
    %c0_12 = arith.constant 0 : index
    %c0_13 = arith.constant 0 : index
    %22 = vector.load %arg3[%c2, %c0_12, %c0_13] : memref<3x128x128xf32, #tpu.memory_space<vmem>>, vector<1x128x128xf32>
    %23 = vector.shape_cast %22 : vector<1x128x128xf32> to vector<128x128xf32>
    %cst_14 = arith.constant dense<0.000000e+00> : vector<16x128xf32>
    %24 = tpu.matmul %21, %23, %cst_14 {dimension_numbers = #tpu.dot_dimension_numbers<[1], [0], [0], [1], [0, 0, 1, 1], [], []>} : vector<16x128xf32>, vector<128x128xf32>, vector<16x128xf32> -> vector<16x128xf32>
    %25 = vector.extract_strided_slice %2 {offsets = [3, 0], sizes = [1, 128], strides = [1, 1]} : vector<4x128xf32> to vector<1x128xf32>
    %26 = vector.broadcast %25 : vector<1x128xf32> to vector<16x128xf32>
    %27 = arith.addf %24, %26 : vector<16x128xf32>
    %28 = tpu.iota {dimensions = array<i32: 1>} : vector<16x128xi32>
    %c6_i32 = arith.constant 6 : i32
    %29 = vector.broadcast %c6_i32 : i32 to vector<16x128xi32>
    %30 = arith.cmpi slt, %28, %29 : vector<16x128xi32>
    %cst_15 = arith.constant -1.000000e+30 : f32
    %31 = vector.broadcast %cst_15 : f32 to vector<16x128xf32>
    %32 = arith.select %30, %27, %31 : vector<16x128xi1>, vector<16x128xf32>
    %cst_16 = arith.constant dense<0xFF800000> : vector<16xf32>
    %33 = vector.multi_reduction <maximumf>, %32, %cst_16 [1] : vector<16x128xf32> to vector<16xf32>
    %34 = vector.shape_cast %33 : vector<16xf32> to vector<16x1xf32>
    %35 = vector.broadcast %34 : vector<16x1xf32> to vector<16x128xf32>
    %36 = arith.subf %32, %35 : vector<16x128xf32>
    %37 = math.exp %36 : vector<16x128xf32>
    %cst_17 = arith.constant dense<0.000000e+00> : vector<16xf32>
    %38 = vector.multi_reduction <add>, %37, %cst_17 [1] : vector<16x128xf32> to vector<16xf32>
    %39 = vector.shape_cast %38 : vector<16xf32> to vector<16x1xf32>
    %40 = vector.broadcast %39 : vector<16x1xf32> to vector<16x128xf32>
    %41 = arith.divf %37, %40 : vector<16x128xf32>
    %c0_18 = arith.constant 0 : index
    %c0_19 = arith.constant 0 : index
    %42 = vector.load %arg5[%c0_18, %c0_19] : memref<16x128xf32, #tpu.memory_space<vmem>>, vector<16x128xf32>
    tpu.vector_store %arg5[%c0_18, %c0_19], %41 {strides = array<i32>} : memref<16x128xf32, #tpu.memory_space<vmem>>, vector<16x128xf32>,
    return
  }
  func.func @transform_0(%arg0: i32) -> (i32, i32) {
    %c0_i32 = arith.constant 0 : i32
    %c0_i32_0 = arith.constant 0 : i32
    return %arg0, %c0_i32 : i32, i32
  }
  func.func @transform_1(%arg0: i32) -> (i32, i32) {
    %c0_i32 = arith.constant 0 : i32
    %c0_i32_0 = arith.constant 0 : i32
    %c0_i32_1 = arith.constant 0 : i32
    return %c0_i32, %c0_i32_0 : i32, i32
  }
  func.func @transform_2(%arg0: i32) -> (i32, i32, i32) {
    %c0_i32 = arith.constant 0 : i32
    %c0_i32_0 = arith.constant 0 : i32
    %c0_i32_1 = arith.constant 0 : i32
    %c0_i32_2 = arith.constant 0 : i32
    return %c0_i32, %c0_i32_0, %c0_i32_1 : i32, i32, i32
  }
  func.func @transform_3(%arg0: i32) -> (i32, i32) {
    %c0_i32 = arith.constant 0 : i32
    %c0_i32_0 = arith.constant 0 : i32
    %c0_i32_1 = arith.constant 0 : i32
    return %c0_i32, %c0_i32_0 : i32, i32
  }
  func.func @transform_4(%arg0: i32) -> (i32, i32) {
    %c0_i32 = arith.constant 0 : i32
    %c0_i32_0 = arith.constant 0 : i32
    return %arg0, %c0_i32 : i32, i32
  }
}

</mosaic_0001>

<llo_original>
// kernel: tpu_custom_call.1
$region0: #{tpu_custom_call.1}
  #allocation0 [shape = 'u32[]', space=smem, size = 0x4, offset = 0x4, fixed_abs, tag = 'smem constant byte address 0x4 - core index']
  #allocation1 [shape = 'u32[144,128]{1,0:T(1,128)}', space=vmem, size = 0x12000, scoped, tag = 'internal scratch']
  %s0 = inlined_call_operand.hbm [shape: f32[16,32], index: 0, kind: input, shape index: {}]
  %s1 = inlined_call_operand.hbm [shape: f32[32,128], index: 1, kind: input, shape index: {}]
  %s2 = inlined_call_operand.hbm [shape: f32[3,128,128], index: 2, kind: input, shape index: {}]
  %s3 = inlined_call_operand.vmem [shape: f32[4,128], index: 3, kind: input, shape index: {}]
  %s4 = inlined_call_operand.hbm [shape: f32[16,128], index: 4, kind: output, shape index: {}]
  %s5 = sld [smem:[#allocation0]]
  $region38: #{tpu_custom_call.1} parent=0
    _
  %s7 = ssub.s32 1, %s5
  %s8 = scalar_select 0, %s7, %s5
  $region1: #{tpu_custom_call.1} parent=0
    #allocation2 [shape = 'u8[8192]{0}', space=vmem, size = 0x2000, scoped, tag = 'input window, operand 0, single buffered']
    #allocation3 [shape = 's32[1]{0}', space=sflag, size = 0x4, scoped, tag = 'scoped memory for tpu_custom_call.1']
    #allocation4 [shape = 's32[1]{0}', space=sflag, size = 0x4, scoped, tag = 'scoped memory for tpu_custom_call.1']
    #allocation5 [shape = 'u8[16384]{0}', space=vmem, size = 0x4000, scoped, tag = 'input window, operand 1, single buffered']
    #allocation6 [shape = 's32[1]{0}', space=sflag, size = 0x4, scoped, tag = 'scoped memory for tpu_custom_call.1']
    #allocation7 [shape = 'u8[196608]{0}', space=vmem, size = 0x30000, scoped, tag = 'input window, operand 2, single buffered']
    #allocation8 [shape = 'u8[8192]{0}', space=vmem, size = 0x2000, scoped, tag = 'output window, operand 0, single buffered']
    %9 = vsyncpa [#allocation3], 0
    %10 = vsyncpa [#allocation6], 0
    %11 = vsyncpa [#allocation4], 0
    // Predicated region
    $region2: #{tpu_custom_call.1} parent=1 // pred_check
      _
    $region3: #{tpu_custom_call.1} parent=1 // pred_check_branch
      %13 = sbr.rel (0) target = $region5
    $region4: #{tpu_custom_call.1} parent=1 // pred_region
      %s15 = ssub.s32 256, 256
      %16 = vsyncadd [#allocation3], %s15
      %s17 = sshll.u32 [#allocation2], 4
      %s18 = int_to_ptr.vmem [resolvable:$true] %s17
      %23 = dma.hbm_to_vmem [thread:$0]  %s0, 256, %s18, [#allocation3], 128, 128, 8
    $region5: #{tpu_custom_call.1} parent=1 // pred_fallthru
      _
    // Predicated region
    $region6: #{tpu_custom_call.1} parent=1 // pred_check
      _
    $region7: #{tpu_custom_call.1} parent=1 // pred_check_branch
      %25 = sbr.rel (0) target = $region9
    $region8: #{tpu_custom_call.1} parent=1 // pred_region
      %s27 = ssub.s32 512, 512
      %28 = vsyncadd [#allocation6], %s27
      %s29 = sshll.u32 [#allocation5], 4
      %s30 = int_to_ptr.vmem [resolvable:$true] %s29
      %35 = dma.hbm_to_vmem [thread:$0]  %s1, 512, %s30, [#allocation6], 128, 128, 8
    $region9: #{tpu_custom_call.1} parent=1 // pred_fallthru
      _
    // Predicated region
    $region10: #{tpu_custom_call.1} parent=1 // pred_check
      _
    $region11: #{tpu_custom_call.1} parent=1 // pred_check_branch
      %37 = sbr.rel (0) target = $region13
    $region12: #{tpu_custom_call.1} parent=1 // pred_region
      %s39 = ssub.s32 6144, 6144
      %40 = vsyncadd [#allocation6], %s39
      %s41 = sshll.u32 [#allocation7], 4
      %s42 = int_to_ptr.vmem [resolvable:$true] %s41
      %47 = dma.hbm_to_vmem [thread:$0]  %s2, 6144, %s42, [#allocation6], 128, 128, 8
    $region13: #{tpu_custom_call.1} parent=1 // pred_fallthru
      _
    // Predicated region
    $region14: #{tpu_custom_call.1} parent=1 // pred_check
      _
    $region15: #{tpu_custom_call.1} parent=1 // pred_check_branch
      %49 = sbr.rel (0) target = $region17
    $region16: #{tpu_custom_call.1} parent=1 // pred_region
      _
    $region17: #{tpu_custom_call.1} parent=1 // pred_fallthru
      _
    // Predicated region
    $region18: #{tpu_custom_call.1} parent=1 // pred_check
      _
    $region19: #{tpu_custom_call.1} parent=1 // pred_check_branch
      %51 = sbr.rel (0) target = $region21
    $region20: #{tpu_custom_call.1} parent=1 // pred_region
      %52 = dma.done [#allocation3], 256
    $region21: #{tpu_custom_call.1} parent=1 // pred_fallthru
      _
    // Predicated region
    $region22: #{tpu_custom_call.1} parent=1 // pred_check
      _
    $region23: #{tpu_custom_call.1} parent=1 // pred_check_branch
      %54 = sbr.rel (0) target = $region25
    $region24: #{tpu_custom_call.1} parent=1 // pred_region
      %55 = dma.done [#allocation6], 512
    $region25: #{tpu_custom_call.1} parent=1 // pred_fallthru
      _
    // Predicated region
    $region26: #{tpu_custom_call.1} parent=1 // pred_check
      _
    $region27: #{tpu_custom_call.1} parent=1 // pred_check_branch
      %57 = sbr.rel (0) target = $region29
    $region28: #{tpu_custom_call.1} parent=1 // pred_region
      %58 = dma.done [#allocation6], 6144
    $region29: #{tpu_custom_call.1} parent=1 // pred_fallthru
      _
    %v59 = vld [vmem:[#allocation2] sm:$0xff]
    %v60 = vld [vmem:[#allocation2 + $0x8] sm:$0xff]
    %v61 = vld [vmem:[#allocation5] sm:$0xff]
    %v62 = vld [vmem:[#allocation5 + $0x8] sm:$0xff]
    %v63 = vld [vmem:[#allocation5 + $0x10] sm:$0xff]
    %v64 = vld [vmem:[#allocation5 + $0x18] sm:$0xff]
    %v65 = vld [vmem:[%s3] sm:$0xf]
    %v66 = vlaneseq
    %v67 = vshrl.u32 %v66, 7
    %v68 = vsub.s32 0, %v67
    %v69 = vrot.slane %v65, %v68
    %vm70 = vcmask 261120
    %v72 = vsel %vm70, %v59, 0
    %v75 = vsel %vm70, %v60, 0
    %77 = vmatprep.subr.mxu0 0.0
    %78 = vmatpush1.msra.mxu0 %v61
    %79 = vmatprep.subr.mxu0 0.0
    %80 = vmatpush1.msra.mxu0 %v62
    %81 = vmatprep.subr.mxu0 0.0
    %82 = vmatpush1.msra.mxu0 %v63
    %83 = vmatprep.subr.mxu0 0.0
    %84 = vmatpush1.msra.mxu0 %v64
    %85 = vmatprep.subr.mxu0 0.0
    %86 = vmatpush1.msra.mxu0 0.0
    %87 = vmatprep.subr.mxu0 0.0
    %88 = vmatpush1.msra.mxu0 0.0
    %89 = vmatprep.subr.mxu0 0.0
    %90 = vmatpush1.msra.mxu0 0.0
    %91 = vmatprep.subr.mxu0 0.0
    %92 = vmatpush1.msra.mxu0 0.0
    %93 = vmatprep.subr.mxu0 0.0
    %94 = vmatpush1.msra.mxu0 0.0
    %95 = vmatprep.subr.mxu0 0.0
    %96 = vmatpush1.msra.mxu0 0.0
    %97 = vmatprep.subr.mxu0 0.0
    %98 = vmatpush1.msra.mxu0 0.0
    %99 = vmatprep.subr.mxu0 0.0
    %100 = vmatpush1.msra.mxu0 0.0
    %101 = vmatprep.subr.mxu0 0.0
    %102 = vmatpush1.msra.mxu0 0.0
    %103 = vmatprep.subr.mxu0 0.0
    %104 = vmatpush1.msra.mxu0 0.0
    %105 = vmatprep.subr.mxu0 0.0
    %106 = vmatpush1.msra.mxu0 0.0
    %107 = vmatprep.subr.mxu0 0.0
    %108 = vmatpush1.msra.mxu0 0.0
    %109 = vmatprep.subr.mxu0 0.0
    %110 = vmatpush1.msra.mxu0 0.0
    %111 = vmatprep.subr.mxu0 0.0
    %112 = vmatpush1.msra.mxu0 0.0
    %113 = vmatprep.subr.mxu0 0.0
    %114 = vmatpush1.msra.mxu0 0.0
    %115 = vmatprep.subr.mxu0 0.0
    %116 = vmatpush1.msra.mxu0 0.0
    %117 = vmatprep.subr.mxu0 0.0
    %118 = vmatpush1.msra.mxu0 0.0
    %119 = vmatprep.subr.mxu0 0.0
    %120 = vmatpush1.msra.mxu0 0.0
    %121 = vmatprep.subr.mxu0 0.0
    %122 = vmatpush1.msra.mxu0 0.0
    %123 = vmatprep.subr.mxu0 0.0
    %124 = vmatpush1.msra.mxu0 0.0
    %125 = vmatprep.subr.mxu0 0.0
    %126 = vmatpush1.msra.mxu0 0.0
    %127 = vmatprep.subr.mxu0 0.0
    %128 = vmatpush1.msra.mxu0 0.0
    %129 = vmatprep.subr.mxu0 0.0
    %130 = vmatpush1.msra.mxu0 0.0
    %131 = vmatprep.subr.mxu0 0.0
    %132 = vmatpush1.msra.mxu0 0.0
    %133 = vmatprep.subr.mxu0 0.0
    %134 = vmatpush1.msra.mxu0 0.0
    %135 = vmatprep.subr.mxu0 0.0
    %136 = vmatpush1.msra.mxu0 0.0
    %137 = vmatprep.subr.mxu0 0.0
    %138 = vmatpush1.msra.mxu0 0.0
    %139 = vmatprep.subr.mxu0 0.0
    %140 = vmatpush1.msra.mxu0 0.0
    %141 = vmatprep.mubr.f32.mxu0 0.0
    %142 = vmatmul.mubr.f32.gmra.mrb[0].mxu0 %v72
    %v143 = vpop.f32.mrb[0].mxu0
    %v144 = vadd.f32 %v69, %v143
    %v145 = vpop.f32.mrb[0].mxu0
    %146 = vmatprep.mubr.f32.mxu0 0.0
    %147 = vmatmul.mubr.f32.gmra.mrb[0].mxu0 %v75
    %v148 = vpop.f32.mrb[0].mxu0
    %v149 = vadd.f32 %v69, %v148
    %v150 = vpop.f32.mrb[0].mxu0
    %151 = vdwg.mxu0
    %v152 = vtanh.pop %v144
    %v153 = vtanh.pop %v149
    %v154 = vld [vmem:[#allocation7] sm:$0xff]
    %v155 = vld [vmem:[#allocation7 + $0x8] sm:$0xff]
    %v156 = vld [vmem:[#allocation7 + $0x10] sm:$0xff]
    %v157 = vld [vmem:[#allocation7 + $0x18] sm:$0xff]
    %v158 = vld [vmem:[#allocation7 + $0x20] sm:$0xff]
    %v159 = vld [vmem:[#allocation7 + $0x28] sm:$0xff]
    %v160 = vld [vmem:[#allocation7 + $0x30] sm:$0xff]
    %v161 = vld [vmem:[#allocation7 + $0x38] sm:$0xff]
    %v162 = vld [vmem:[#allocation7 + $0x40] sm:$0xff]
    %v163 = vld [vmem:[#allocation7 + $0x48] sm:$0xff]
    %v164 = vld [vmem:[#allocation7 + $0x50] sm:$0xff]
    %v165 = vld [vmem:[#allocation7 + $0x58] sm:$0xff]
    %v166 = vld [vmem:[#allocation7 + $0x60] sm:$0xff]
    %v167 = vld [vmem:[#allocation7 + $0x68] sm:$0xff]
    %v168 = vld [vmem:[#allocation7 + $0x70] sm:$0xff]
    %v169 = vld [vmem:[#allocation7 + $0x78] sm:$0xff]
    %v170 = vlaneseq
    %v171 = vshrl.u32 %v170, 7
    %v172 = vsub.s32 1, %v171
    %v173 = vrot.slane %v65, %v172
    %174 = vmatprep.subr.mxu0 0.0
    %175 = vmatpush1.msra.mxu0 %v154
    %176 = vmatprep.subr.mxu0 0.0
    %177 = vmatpush1.msra.mxu0 %v155
    %178 = vmatprep.subr.mxu0 0.0
    %179 = vmatpush1.msra.mxu0 %v156
    %180 = vmatprep.subr.mxu0 0.0
    %181 = vmatpush1.msra.mxu0 %v157
    %182 = vmatprep.subr.mxu0 0.0
    %183 = vmatpush1.msra.mxu0 %v158
    %184 = vmatprep.subr.mxu0 0.0
    %185 = vmatpush1.msra.mxu0 %v159
    %186 = vmatprep.subr.mxu0 0.0
    %187 = vmatpush1.msra.mxu0 %v160
    %188 = vmatprep.subr.mxu0 0.0
    %189 = vmatpush1.msra.mxu0 %v161
    %190 = vmatprep.subr.mxu0 0.0
    %191 = vmatpush1.msra.mxu0 %v162
    %192 = vmatprep.subr.mxu0 0.0
    %193 = vmatpush1.msra.mxu0 %v163
    %194 = vmatprep.subr.mxu0 0.0
    %195 = vmatpush1.msra.mxu0 %v164
    %196 = vmatprep.subr.mxu0 0.0
    %197 = vmatpush1.msra.mxu0 %v165
    %198 = vmatprep.subr.mxu0 0.0
    %199 = vmatpush1.msra.mxu0 %v166
    %200 = vmatprep.subr.mxu0 0.0
    %201 = vmatpush1.msra.mxu0 %v167
    %202 = vmatprep.subr.mxu0 0.0
    %203 = vmatpush1.msra.mxu0 %v168
    %204 = vmatprep.subr.mxu0 0.0
    %205 = vmatpush1.msra.mxu0 %v169
    %206 = vmatprep.subr.mxu0 0.0
    %207 = vmatpush1.msra.mxu0 0.0
    %208 = vmatprep.subr.mxu0 0.0
    %209 = vmatpush1.msra.mxu0 0.0
    %210 = vmatprep.subr.mxu0 0.0
    %211 = vmatpush1.msra.mxu0 0.0
    %212 = vmatprep.subr.mxu0 0.0
    %213 = vmatpush1.msra.mxu0 0.0
    %214 = vmatprep.subr.mxu0 0.0
    %215 = vmatpush1.msra.mxu0 0.0
    %216 = vmatprep.subr.mxu0 0.0
    %217 = vmatpush1.msra.mxu0 0.0
    %218 = vmatprep.subr.mxu0 0.0
    %219 = vmatpush1.msra.mxu0 0.0
    %220 = vmatprep.subr.mxu0 0.0
    %221 = vmatpush1.msra.mxu0 0.0
    %222 = vmatprep.subr.mxu0 0.0
    %223 = vmatpush1.msra.mxu0 0.0
    %224 = vmatprep.subr.mxu0 0.0
    %225 = vmatpush1.msra.mxu0 0.0
    %226 = vmatprep.subr.mxu0 0.0
    %227 = vmatpush1.msra.mxu0 0.0
    %228 = vmatprep.subr.mxu0 0.0
    %229 = vmatpush1.msra.mxu0 0.0
    %230 = vmatprep.subr.mxu0 0.0
    %231 = vmatpush1.msra.mxu0 0.0
    %232 = vmatprep.subr.mxu0 0.0
    %233 = vmatpush1.msra.mxu0 0.0
    %234 = vmatprep.subr.mxu0 0.0
    %235 = vmatpush1.msra.mxu0 0.0
    %236 = vmatprep.subr.mxu0 0.0
    %237 = vmatpush1.msra.mxu0 0.0
    %238 = vmatprep.mubr.f32.mxu0 0.0
    %239 = vmatmul.mubr.f32.gmra.mrb[0].mxu0 %v152
    %v240 = vpop.f32.mrb[0].mxu0
    %v241 = vadd.f32 %v173, %v240
    %v242 = vpop.f32.mrb[0].mxu0
    %243 = vmatprep.mubr.f32.mxu0 0.0
    %244 = vmatmul.mubr.f32.gmra.mrb[0].mxu0 %v153
    %v245 = vpop.f32.mrb[0].mxu0
    %v246 = vadd.f32 %v173, %v245
    %v247 = vpop.f32.mrb[0].mxu0
    %248 = vdwg.mxu0
    %v249 = vtanh.pop %v241
    %v250 = vtanh.pop %v246
    %s251 = scalar_lea.vmem [#allocation7], 128
    %v252 = vld [vmem:[%s251] sm:$0xff]
    %v253 = vld [vmem:[%s251 + $0x8] sm:$0xff]
    %v254 = vld [vmem:[%s251 + $0x10] sm:$0xff]
    %v255 = vld [vmem:[%s251 + $0x18] sm:$0xff]
    %v256 = vld [vmem:[%s251 + $0x20] sm:$0xff]
    %v257 = vld [vmem:[%s251 + $0x28] sm:$0xff]
    %v258 = vld [vmem:[%s251 + $0x30] sm:$0xff]
    %v259 = vld [vmem:[%s251 + $0x38] sm:$0xff]
    %v260 = vld [vmem:[%s251 + $0x40] sm:$0xff]
    %v261 = vld [vmem:[%s251 + $0x48] sm:$0xff]
    %v262 = vld [vmem:[%s251 + $0x50] sm:$0xff]
    %v263 = vld [vmem:[%s251 + $0x58] sm:$0xff]
    %v264 = vld [vmem:[%s251 + $0x60] sm:$0xff]
    %v265 = vld [vmem:[%s251 + $0x68] sm:$0xff]
    %v266 = vld [vmem:[%s251 + $0x70] sm:$0xff]
    %v267 = vld [vmem:[%s251 + $0x78] sm:$0xff]
    %v268 = vlaneseq
    %v269 = vshrl.u32 %v268, 7
    %v270 = vsub.s32 2, %v269
    %v271 = vrot.slane %v65, %v270
    %272 = vmatprep.subr.mxu0 0.0
    %273 = vmatpush1.msra.mxu0 %v252
    %274 = vmatprep.subr.mxu0 0.0
    %275 = vmatpush1.msra.mxu0 %v253
    %276 = vmatprep.subr.mxu0 0.0
    %277 = vmatpush1.msra.mxu0 %v254
    %278 = vmatprep.subr.mxu0 0.0
    %279 = vmatpush1.msra.mxu0 %v255
    %280 = vmatprep.subr.mxu0 0.0
    %281 = vmatpush1.msra.mxu0 %v256
    %282 = vmatprep.subr.mxu0 0.0
    %283 = vmatpush1.msra.mxu0 %v257
    %284 = vmatprep.subr.mxu0 0.0
    %285 = vmatpush1.msra.mxu0 %v258
    %286 = vmatprep.subr.mxu0 0.0
    %287 = vmatpush1.msra.mxu0 %v259
    %288 = vmatprep.subr.mxu0 0.0
    %289 = vmatpush1.msra.mxu0 %v260
    %290 = vmatprep.subr.mxu0 0.0
    %291 = vmatpush1.msra.mxu0 %v261
    %292 = vmatprep.subr.mxu0 0.0
    %293 = vmatpush1.msra.mxu0 %v262
    %294 = vmatprep.subr.mxu0 0.0
    %295 = vmatpush1.msra.mxu0 %v263
    %296 = vmatprep.subr.mxu0 0.0
    %297 = vmatpush1.msra.mxu0 %v264
    %298 = vmatprep.subr.mxu0 0.0
    %299 = vmatpush1.msra.mxu0 %v265
    %300 = vmatprep.subr.mxu0 0.0
    %301 = vmatpush1.msra.mxu0 %v266
    %302 = vmatprep.subr.mxu0 0.0
    %303 = vmatpush1.msra.mxu0 %v267
    %304 = vmatprep.subr.mxu0 0.0
    %305 = vmatpush1.msra.mxu0 0.0
    %306 = vmatprep.subr.mxu0 0.0
    %307 = vmatpush1.msra.mxu0 0.0
    %308 = vmatprep.subr.mxu0 0.0
    %309 = vmatpush1.msra.mxu0 0.0
    %310 = vmatprep.subr.mxu0 0.0
    %311 = vmatpush1.msra.mxu0 0.0
    %312 = vmatprep.subr.mxu0 0.0
    %313 = vmatpush1.msra.mxu0 0.0
    %314 = vmatprep.subr.mxu0 0.0
    %315 = vmatpush1.msra.mxu0 0.0
    %316 = vmatprep.subr.mxu0 0.0
    %317 = vmatpush1.msra.mxu0 0.0
    %318 = vmatprep.subr.mxu0 0.0
    %319 = vmatpush1.msra.mxu0 0.0
    %320 = vmatprep.subr.mxu0 0.0
    %321 = vmatpush1.msra.mxu0 0.0
    %322 = vmatprep.subr.mxu0 0.0
    %323 = vmatpush1.msra.mxu0 0.0
    %324 = vmatprep.subr.mxu0 0.0
    %325 = vmatpush1.msra.mxu0 0.0
    %326 = vmatprep.subr.mxu0 0.0
    %327 = vmatpush1.msra.mxu0 0.0
    %328 = vmatprep.subr.mxu0 0.0
    %329 = vmatpush1.msra.mxu0 0.0
    %330 = vmatprep.subr.mxu0 0.0
    %331 = vmatpush1.msra.mxu0 0.0
    %332 = vmatprep.subr.mxu0 0.0
    %333 = vmatpush1.msra.mxu0 0.0
    %334 = vmatprep.subr.mxu0 0.0
    %335 = vmatpush1.msra.mxu0 0.0
    %336 = vmatprep.mubr.f32.mxu0 0.0
    %337 = vmatmul.mubr.f32.gmra.mrb[0].mxu0 %v249
    %v338 = vpop.f32.mrb[0].mxu0
    %v339 = vadd.f32 %v271, %v338
    %v340 = vpop.f32.mrb[0].mxu0
    %341 = vmatprep.mubr.f32.mxu0 0.0
    %342 = vmatmul.mubr.f32.gmra.mrb[0].mxu0 %v250
    %v343 = vpop.f32.mrb[0].mxu0
    %v344 = vadd.f32 %v271, %v343
    %v345 = vpop.f32.mrb[0].mxu0
    %346 = vdwg.mxu0
    %v347 = vtanh.pop %v339
    %v348 = vtanh.pop %v344
    %s349 = scalar_lea.vmem [#allocation7], 256
    %v350 = vld [vmem:[%s349] sm:$0xff]
    %v351 = vld [vmem:[%s349 + $0x8] sm:$0xff]
    %v352 = vld [vmem:[%s349 + $0x10] sm:$0xff]
    %v353 = vld [vmem:[%s349 + $0x18] sm:$0xff]
    %v354 = vld [vmem:[%s349 + $0x20] sm:$0xff]
    %v355 = vld [vmem:[%s349 + $0x28] sm:$0xff]
    %v356 = vld [vmem:[%s349 + $0x30] sm:$0xff]
    %v357 = vld [vmem:[%s349 + $0x38] sm:$0xff]
    %v358 = vld [vmem:[%s349 + $0x40] sm:$0xff]
    %v359 = vld [vmem:[%s349 + $0x48] sm:$0xff]
    %v360 = vld [vmem:[%s349 + $0x50] sm:$0xff]
    %v361 = vld [vmem:[%s349 + $0x58] sm:$0xff]
    %v362 = vld [vmem:[%s349 + $0x60] sm:$0xff]
    %v363 = vld [vmem:[%s349 + $0x68] sm:$0xff]
    %v364 = vld [vmem:[%s349 + $0x70] sm:$0xff]
    %v365 = vld [vmem:[%s349 + $0x78] sm:$0xff]
    %v366 = vlaneseq
    %v367 = vshrl.u32 %v366, 7
    %v368 = vsub.s32 3, %v367
    %v369 = vrot.slane %v65, %v368
    %370 = vmatprep.subr.mxu0 0.0
    %371 = vmatpush1.msra.mxu0 %v350
    %372 = vmatprep.subr.mxu0 0.0
    %373 = vmatpush1.msra.mxu0 %v351
    %374 = vmatprep.subr.mxu0 0.0
    %375 = vmatpush1.msra.mxu0 %v352
    %376 = vmatprep.subr.mxu0 0.0
    %377 = vmatpush1.msra.mxu0 %v353
    %378 = vmatprep.subr.mxu0 0.0
    %379 = vmatpush1.msra.mxu0 %v354
    %380 = vmatprep.subr.mxu0 0.0
    %381 = vmatpush1.msra.mxu0 %v355
    %382 = vmatprep.subr.mxu0 0.0
    %383 = vmatpush1.msra.mxu0 %v356
    %384 = vmatprep.subr.mxu0 0.0
    %385 = vmatpush1.msra.mxu0 %v357
    %386 = vmatprep.subr.mxu0 0.0
    %387 = vmatpush1.msra.mxu0 %v358
    %388 = vmatprep.subr.mxu0 0.0
    %389 = vmatpush1.msra.mxu0 %v359
    %390 = vmatprep.subr.mxu0 0.0
    %391 = vmatpush1.msra.mxu0 %v360
    %392 = vmatprep.subr.mxu0 0.0
    %393 = vmatpush1.msra.mxu0 %v361
    %394 = vmatprep.subr.mxu0 0.0
    %395 = vmatpush1.msra.mxu0 %v362
    %396 = vmatprep.subr.mxu0 0.0
    %397 = vmatpush1.msra.mxu0 %v363
    %398 = vmatprep.subr.mxu0 0.0
    %399 = vmatpush1.msra.mxu0 %v364
    %400 = vmatprep.subr.mxu0 0.0
    %401 = vmatpush1.msra.mxu0 %v365
    %402 = vmatprep.subr.mxu0 0.0
    %403 = vmatpush1.msra.mxu0 0.0
    %404 = vmatprep.subr.mxu0 0.0
    %405 = vmatpush1.msra.mxu0 0.0
    %406 = vmatprep.subr.mxu0 0.0
    %407 = vmatpush1.msra.mxu0 0.0
    %408 = vmatprep.subr.mxu0 0.0
    %409 = vmatpush1.msra.mxu0 0.0
    %410 = vmatprep.subr.mxu0 0.0
    %411 = vmatpush1.msra.mxu0 0.0
    %412 = vmatprep.subr.mxu0 0.0
    %413 = vmatpush1.msra.mxu0 0.0
    %414 = vmatprep.subr.mxu0 0.0
    %415 = vmatpush1.msra.mxu0 0.0
    %416 = vmatprep.subr.mxu0 0.0
    %417 = vmatpush1.msra.mxu0 0.0
    %418 = vmatprep.subr.mxu0 0.0
    %419 = vmatpush1.msra.mxu0 0.0
    %420 = vmatprep.subr.mxu0 0.0
    %421 = vmatpush1.msra.mxu0 0.0
    %422 = vmatprep.subr.mxu0 0.0
    %423 = vmatpush1.msra.mxu0 0.0
    %424 = vmatprep.subr.mxu0 0.0
    %425 = vmatpush1.msra.mxu0 0.0
    %426 = vmatprep.subr.mxu0 0.0
    %427 = vmatpush1.msra.mxu0 0.0
    %428 = vmatprep.subr.mxu0 0.0
    %429 = vmatpush1.msra.mxu0 0.0
    %430 = vmatprep.subr.mxu0 0.0
    %431 = vmatpush1.msra.mxu0 0.0
    %432 = vmatprep.subr.mxu0 0.0
    %433 = vmatpush1.msra.mxu0 0.0
    %434 = vmatprep.mubr.f32.mxu0 0.0
    %435 = vmatmul.mubr.f32.gmra.mrb[0].mxu0 %v347
    %v436 = vpop.f32.mrb[0].mxu0
    %v437 = vadd.f32 %v369, %v436
    %v438 = vpop.f32.mrb[0].mxu0
    %439 = vmatprep.mubr.f32.mxu0 0.0
    %440 = vmatmul.mubr.f32.gmra.mrb[0].mxu0 %v348
    %v441 = vpop.f32.mrb[0].mxu0
    %v442 = vadd.f32 %v369, %v441
    %v443 = vpop.f32.mrb[0].mxu0
    %444 = vdwg.mxu0
    %v445 = vlaneseq
    %v446 = vand.u32 %v445, 127
    %vm447 = vcmp.lt.s32.totalorder %v446, 6
    %v448 = vsel %vm447, %v437, -1e+30
    %v449 = vsel %vm447, %v442, -1e+30
    %450 = vmax.xlane.f32.xlu0 %v448
    %v451 = vpop.xlane.xlu0 %450
    %452 = vmax.xlane.f32.xlu0 %v449
    %v453 = vpop.xlane.xlu0 %452
    %v454 = vsub.f32 %v448, %v451
    %v455 = vsub.f32 %v449, %v453
    %v456 = vmul.f32 %v454, 1.442695
    %v457 = vpow.pop %v456
    %v458 = vmul.f32 %v455, 1.442695
    %v459 = vpow.pop %v458
    %460 = vadd.xlane.f32.xlu0 %v457
    %v461 = vpop.xlane.xlu0 %460
    %462 = vadd.xlane.f32.xlu0 %v459
    %v463 = vpop.xlane.xlu0 %462
    %v464 = vrcp.pop %v461
    %v465 = vmul.f32 %v457, %v464
    %v466 = vrcp.pop %v463
    %v467 = vmul.f32 %v459, %v466
    %468 = vst [vmem:[#allocation8] sm:$0xff] %v465
    %469 = vst [vmem:[#allocation8 + $0x8] sm:$0xff] %v467
    // Predicated region
    $region30: #{tpu_custom_call.1} parent=1 // pred_check
      _
    $region31: #{tpu_custom_call.1} parent=1 // pred_check_branch
      %471 = sbr.rel (0) target = $region33
    $region32: #{tpu_custom_call.1} parent=1 // pred_region
      %s473 = ssub.s32 256, 256
      %474 = vsyncadd [#allocation4], %s473
      %s475 = sshll.u32 [#allocation8], 4
      %s476 = int_to_ptr.vmem [resolvable:$true] %s475
      %481 = dma.vmem_to_hbm [thread:$0]  %s476, 256, %s4, [#allocation4], 128, 128, 8
    $region33: #{tpu_custom_call.1} parent=1 // pred_fallthru
      _
    // Predicated region
    $region34: #{tpu_custom_call.1} parent=1 // pred_check
      _
    $region35: #{tpu_custom_call.1} parent=1 // pred_check_branch
      %483 = sbr.rel (0) target = $region37
    $region36: #{tpu_custom_call.1} parent=1 // pred_region
      %484 = dma.done [#allocation4], 256
    $region37: #{tpu_custom_call.1} parent=1 // pred_fallthru
      _
    %485 = vsyncpa [#allocation3], 1
    %486 = vsyncpa [#allocation6], 1
    %487 = vsyncpa [#allocation4], 1

</llo_original>
